<compile_context>
chip_gen: v5e
topology: v5e:2x2
jax: 0.10.0
libtpu: 0.0.40
codegen_flags: <defaults>
</compile_context>

<pallas_src>
import functools

import jax
import jax.numpy as jnp
from jax.experimental import pallas as pl
from jax.experimental.pallas import tpu as pltpu


def _round_up(n: int, m: int) -> int:
    return ((n + m - 1) // m) * m


def _rosenbrock_kernel(a: float):
    def kernel(x_ref, o_ref):
        # x_ref: (2, TILE_B), o_ref: (1, TILE_B).  Sublane-row selects; the
        # lane axis (batch) is fully dense.
        x1 = x_ref[0:1, :].astype(jnp.float32)   # (1, TILE_B)
        x2 = x_ref[1:2, :].astype(jnp.float32)   # (1, TILE_B)
        one_minus_x1 = 1.0 - x1
        out = a * jnp.abs(x1 * x1 - x2) + one_minus_x1 * one_minus_x1
        o_ref[...] = out.astype(o_ref.dtype)
    return kernel


def nonsmooth_rosenbrock(x: jax.Array, a: float = 8.0, tile_b: int | None = None) -> jax.Array:
    """x: (batch, 2) -> (batch, 1), matching the PyTorch module semantics."""
    assert x.ndim == 2 and x.shape[1] == 2, "x should be of shape (batch_size, 2)"
    batch = x.shape[0]

    # Lane-dense tile along batch: multiple of 128, capped so per-block VMEM
    # (double-buffered input + output) stays far under scoped limits on all
    # of v5e / v6e / v7x.
    if tile_b is None:
        tile_b = min(128 * 1024, _round_up(max(batch, 128), 128))
    tile_b = _round_up(tile_b, 128)
    padded = _round_up(batch, tile_b)

    # Present the data lane-dense: (2, B) in, (1, B) out.  Transpose/pad happen
    # once in the wrapper; the reshape back to (B, 1) is metadata-only.
    xt = jnp.transpose(x)                      # (2, B)
    if padded != batch:
        xt = jnp.pad(xt, ((0, 0), (0, padded - batch)))

    itemsize = jnp.dtype(x.dtype).itemsize
    cost = pl.CostEstimate(
        flops=8 * padded,
        transcendentals=0,
        bytes_accessed=3 * itemsize * padded,  # 2 rows in, 1 row out
    )

    out = pl.pallas_call(
        _rosenbrock_kernel(a),
        out_shape=jax.ShapeDtypeStruct((1, padded), x.dtype),
        grid=(padded // tile_b,),
        in_specs=[pl.BlockSpec((2, tile_b), lambda i: (0, i))],
        out_specs=pl.BlockSpec((1, tile_b), lambda i: (0, i)),
        compiler_params=pltpu.CompilerParams(
            dimension_semantics=("parallel",),
        ),
        cost_estimate=cost,
    )(xt)

    # Slice away batch padding and restore (B, 1).
    return out[0, :batch][:, None]


def nonsmooth_rosenbrock_ref(x: jax.Array, a: float = 8.0) -> jax.Array:
    """Pure-JAX reference (also the right choice for tiny batches)."""
    x32 = x.astype(jnp.float32)
    out = a * jnp.abs(x32[:, 0] ** 2 - x32[:, 1]) + (1.0 - x32[:, 0]) ** 2
    return out[:, None].astype(x.dtype)


if __name__ == "__main__":
    key = jax.random.PRNGKey(0)
    batch = 8
    x = jax.random.normal(key, (batch, 2), dtype=jnp.float32)

    fn = jax.jit(functools.partial(nonsmooth_rosenbrock, a=8.0))
    out = jax.block_until_ready(fn(x))

    ref = nonsmooth_rosenbrock_ref(x, a=8.0)
    assert out.shape == (batch, 1), out.shape
    assert jnp.allclose(out, ref, atol=1e-6, rtol=1e-6), (out, ref)

    # Also exercise a batch that is not a multiple of the 128-lane tile,
    # to check padding / slicing round-trip.
    x2 = jax.random.normal(jax.random.PRNGKey(1), (300, 2), dtype=jnp.float32)
    out2 = jax.block_until_ready(nonsmooth_rosenbrock(x2, a=8.0))
    ref2 = nonsmooth_rosenbrock_ref(x2, a=8.0)
    assert out2.shape == (300, 1)
    assert jnp.allclose(out2, ref2, atol=1e-6, rtol=1e-6)

    print("KERNEL_OK")
</pallas_src>

<mosaic_0001>
module attributes {stable_mosaic.version = 11 : i64} {
  func.func @kernel(%arg0: i32, %arg1: memref<2x128xf32, #tpu.memory_space<vmem>>, %arg2: memref<1x128xf32, #tpu.memory_space<vmem>>) attributes {dimension_semantics = [#tpu.dimension_semantics<parallel>], iteration_bounds = array<i64: 1>, scalar_prefetch = 0 : i64, scratch_operands = 0 : i64, tpu.core_type = #tpu.core_type<tc>, window_params = [{transform_indices = @transform_0, window_bounds = array<i64: 2, 128>}, {transform_indices = @transform_1, window_bounds = array<i64: 1, 128>}]} {
    %c0 = arith.constant 0 : index
    %c0_0 = arith.constant 0 : index
    %0 = vector.load %arg1[%c0, %c0_0] : memref<2x128xf32, #tpu.memory_space<vmem>>, vector<1x128xf32>
    %c1 = arith.constant 1 : index
    %c0_1 = arith.constant 0 : index
    %1 = vector.load %arg1[%c1, %c0_1] : memref<2x128xf32, #tpu.memory_space<vmem>>, vector<1x128xf32>
    %cst = arith.constant 1.000000e+00 : f32
    %2 = vector.broadcast %cst : f32 to vector<1x128xf32>
    %3 = arith.subf %2, %0 : vector<1x128xf32>
    %4 = arith.mulf %0, %0 : vector<1x128xf32>
    %5 = arith.subf %4, %1 : vector<1x128xf32>
    %6 = math.absf %5 : vector<1x128xf32>
    %cst_2 = arith.constant 8.000000e+00 : f32
    %7 = vector.broadcast %cst_2 : f32 to vector<1x128xf32>
    %8 = arith.mulf %7, %6 : vector<1x128xf32>
    %9 = arith.mulf %3, %3 : vector<1x128xf32>
    %10 = arith.addf %8, %9 : vector<1x128xf32>
    %c0_3 = arith.constant 0 : index
    %c0_4 = arith.constant 0 : index
    %11 = vector.load %arg2[%c0_3, %c0_4] : memref<1x128xf32, #tpu.memory_space<vmem>>, vector<1x128xf32>
    tpu.vector_store %arg2[%c0_3, %c0_4], %10 {strides = array<i32>} : memref<1x128xf32, #tpu.memory_space<vmem>>, vector<1x128xf32>,
    return
  }
  func.func @transform_0(%arg0: i32) -> (i32, i32) {
    %c0_i32 = arith.constant 0 : i32
    %c0_i32_0 = arith.constant 0 : i32
    return %c0_i32, %arg0 : i32, i32
  }
  func.func @transform_1(%arg0: i32) -> (i32, i32) {
    %c0_i32 = arith.constant 0 : i32
    %c0_i32_0 = arith.constant 0 : i32
    return %c0_i32, %arg0 : i32, i32
  }
}

</mosaic_0001>

<llo_original>
// kernel: nonsmooth_rosenbrock.1
$region0: #{nonsmooth_rosenbrock.1}
  #allocation0 [shape = 'u32[]', space=smem, size = 0x4, offset = 0x4, fixed_abs, tag = 'smem constant byte address 0x4 - core index']
  #allocation1 [shape = 'u32[72,128]{1,0:T(1,128)}', space=vmem, size = 0x9000, scoped, tag = 'internal scratch']
  %s0 = inlined_call_operand.vmem [shape: f32[2,128], index: 0, kind: input, shape index: {}]
  %s1 = inlined_call_operand.vmem [shape: f32[1,128], index: 1, kind: output, shape index: {}]
  %s2 = sld [smem:[#allocation0]]
  $region14: #{nonsmooth_rosenbrock.1} parent=0
    _
  %s4 = ssub.s32 1, %s2
  %s5 = scalar_select 0, %s4, %s2
  // Predicated region
  $region2: #{nonsmooth_rosenbrock.1} parent=0 // pred_check
    _
  $region3: #{nonsmooth_rosenbrock.1} parent=0 // pred_check_branch
    %7 = sbr.rel (0) target = $region5
  $region4: #{nonsmooth_rosenbrock.1} parent=0 // pred_region
    _
  $region5: #{nonsmooth_rosenbrock.1} parent=0 // pred_fallthru
    _
  %v8 = vld [vmem:[%s0] sm:$0x1]
  %v9 = vld [vmem:[%s0 + $0x1] sm:$0x1]
  %v10 = vsub.f32 1.0, %v8
  %v11 = vmul.f32 %v8, %v8
  %v12 = vsub.f32 %v11, %v9
  %v13 = vand.u32 2147483647, %v12
  %v14 = vmul.f32 %v13, 8.0
  %v15 = vmul.f32 %v10, %v10
  %v16 = vadd.f32 %v14, %v15
  %17 = vst [vmem:[%s1] sm:$0x1] %v16
  // Predicated region
  $region6: #{nonsmooth_rosenbrock.1} parent=0 // pred_check
    _
  $region7: #{nonsmooth_rosenbrock.1} parent=0 // pred_check_branch
    %19 = sbr.rel (0) target = $region9
  $region8: #{nonsmooth_rosenbrock.1} parent=0 // pred_region
    _
  $region9: #{nonsmooth_rosenbrock.1} parent=0 // pred_fallthru
    _
  // Predicated region
  $region10: #{nonsmooth_rosenbrock.1} parent=0 // pred_check
    _
  $region11: #{nonsmooth_rosenbrock.1} parent=0 // pred_check_branch
    %21 = sbr.rel (0) target = $region13
  $region12: #{nonsmooth_rosenbrock.1} parent=0 // pred_region
    _
  $region13: #{nonsmooth_rosenbrock.1} parent=0 // pred_fallthru
    _

</llo_original>
